<compile_context>
chip_gen: v7x
topology: tpu7x:2x2x1
jax: 0.10.0
libtpu: 0.0.40
codegen_flags: <defaults>
</compile_context>

<pallas_src>
import jax
import jax.numpy as jnp
from jax.experimental import pallas as pl
from jax.experimental.pallas import tpu as pltpu

_LANES = 128
_SINGLE_SHOT_MAX = 128   # grid-free path only for small batches


def _round_up(x, m):
    return (x + m - 1) // m * m


def mlp_kernel(x_ref, w1_ref, w2_ref, w3_ref, bias_ref, out_ref):
    """x: (tb, in) bf16; w*: bf16, lane-padded; bias: (8, Np) f32 rows=[c1, c2, b3]."""
    x = x_ref[...]
    c1 = bias_ref[0:1, :]          # (1, Np) f32, static sublane slices
    c2 = bias_ref[1:2, :]
    c3 = bias_ref[2:3, :]

    # Layer 1: folded Linear+BatchNorm, then ReLU (epilogue kept in f32).
    h = jnp.dot(x, w1_ref[...], preferred_element_type=jnp.float32) + c1
    h = jnp.maximum(h, 0.0)

    # Layer 2: folded Linear+BatchNorm, then ReLU.
    h = jnp.dot(h.astype(w2_ref.dtype), w2_ref[...],
                preferred_element_type=jnp.float32) + c2
    h = jnp.maximum(h, 0.0)

    # Output layer: plain Linear (no norm / activation).  Store bf16 but keep
    # the full 128-lane width so the store is an unmasked vst.
    out = jnp.dot(h.astype(w3_ref.dtype), w3_ref[...],
                  preferred_element_type=jnp.float32) + c3
    out_ref[...] = out.astype(out_ref.dtype)


def prepare_params(params, eps=1e-5, compute_dtype=jnp.bfloat16):
    """Fold eval-mode BN into the Linears, pad lane dims to 128, cast MXU inputs to bf16.

    Done once, outside the per-call forward path.  Folding is done in f32; only
    the final operands are cast to bf16.
    """
    (w1, b1, g1, beta1, m1, v1,
     w2, b2, g2, beta2, m2, v2,
     w3, b3) = params
    hidden = w1.shape[1]
    emb = w3.shape[1]
    n_pad = _round_up(max(hidden, emb), _LANES)

    # Eval-mode BatchNorm1d as per-feature scale/shift, folded into the Linear:
    #   BN(x @ W + b) = x @ (W * s) + (b * s + t),  s = g / sqrt(v + eps), t = beta - m * s
    s1 = g1 / jnp.sqrt(v1 + eps)
    t1 = beta1 - m1 * s1
    s2 = g2 / jnp.sqrt(v2 + eps)
    t2 = beta2 - m2 * s2

    w1f = w1 * s1[None, :]
    c1 = b1 * s1 + t1
    w2f = w2 * s2[None, :]
    c2 = b2 * s2 + t2

    # Zero-pad hidden/embedding lane dims to a common 128-multiple.  Padded
    # columns/rows are zero, so padded activations stay exactly zero.
    w1p = jnp.pad(w1f, ((0, 0), (0, n_pad - hidden))).astype(compute_dtype)
    w2p = jnp.pad(w2f, ((0, n_pad - hidden), (0, n_pad - hidden))).astype(compute_dtype)
    w3p = jnp.pad(w3, ((0, n_pad - hidden), (0, n_pad - emb))).astype(compute_dtype)

    # Stack the three per-feature shift rows into one (8, n_pad) f32 operand.
    bias = jnp.zeros((8, n_pad), jnp.float32)
    bias = bias.at[0, :hidden].set(c1)
    bias = bias.at[1, :hidden].set(c2)
    bias = bias.at[2, :emb].set(b3)

    return (w1p, w2p, w3p, bias, emb)


def _cost_estimate(rows, in_size, n_pad, weight_arrays):
    """Advisory cost hint for XLA around the custom call."""
    flops = 2 * rows * (in_size * n_pad + 2 * n_pad * n_pad)
    w_bytes = sum(int(w.size) * w.dtype.itemsize for w in weight_arrays)
    bytes_accessed = rows * (in_size * 2 + n_pad * 2) + w_bytes   # bf16 x, bf16 out
    return pl.CostEstimate(flops=flops, transcendentals=0,
                           bytes_accessed=bytes_accessed)


def mlp_encoder_forward(sequence, prepared, *, tile_b=512):
    """sequence: (B, L, A) float one-hot.  Returns (B, embedding_size) float32.

    Call under jit (the example does) so the reshape / bf16 cast / output slice
    fuse with the kernel instead of making separate HBM round-trips.
    """
    w1p, w2p, w3p, bias, emb = prepared
    B = sequence.shape[0]
    x = sequence.reshape(B, -1).astype(w1p.dtype)     # torch: sequence.reshape(B, -1)
    in_size = x.shape[1]
    n_pad = w1p.shape[1]
    weights = (w1p, w2p, w3p, bias)

    if B <= _SINGLE_SHOT_MAX:
        # Tiny batches: all operands fit in VMEM; no grid -> no pipeline
        # prologue/epilogue.  Default (full-array) BlockSpecs.
        out = pl.pallas_call(
            mlp_kernel,
            out_shape=jax.ShapeDtypeStruct((B, n_pad), jnp.bfloat16),
            cost_estimate=_cost_estimate(B, in_size, n_pad, weights),
        )(x, *weights)
        return out[:, :emb].astype(jnp.float32)

    # Batch-tiled path: x / out tiles stream (double-buffered) while the folded
    # weights and bias stack stay VMEM-resident (constant index_map).  Cap the
    # tile so there are always >= 2 grid steps; the batch axis is "parallel" so
    # v7x megacore can split the steps across its two TensorCores.
    tile_eff = min(tile_b, _round_up(-(-B // 2), _LANES))
    b_pad = _round_up(B, tile_eff)
    if b_pad != B:
        x = jnp.pad(x, ((0, b_pad - B), (0, 0)))
    out = pl.pallas_call(
        mlp_kernel,
        out_shape=jax.ShapeDtypeStruct((b_pad, n_pad), jnp.bfloat16),
        grid=(b_pad // tile_eff,),
        in_specs=[
            pl.BlockSpec((tile_eff, in_size), lambda i: (i, 0)),
            pl.BlockSpec(w1p.shape, lambda i: (0, 0)),
            pl.BlockSpec(w2p.shape, lambda i: (0, 0)),
            pl.BlockSpec(w3p.shape, lambda i: (0, 0)),
            pl.BlockSpec(bias.shape, lambda i: (0, 0)),
        ],
        out_specs=pl.BlockSpec((tile_eff, n_pad), lambda i: (i, 0)),
        compiler_params=pltpu.CompilerParams(
            dimension_semantics=("parallel",)),
        cost_estimate=_cost_estimate(b_pad, in_size, n_pad, weights),
    )(x, *weights)
    return out[:B, :emb].astype(jnp.float32)


def _init_params(key, in_size, hidden_size, out_size):
    """Deterministic synthetic parameters (PyTorch Linear shapes, transposed to (in, out))."""
    ks = jax.random.split(key, 8)

    def lin(kw, kb, fan_in, fan_out):
        bound = 1.0 / jnp.sqrt(fan_in)
        w = jax.random.uniform(kw, (fan_in, fan_out), jnp.float32, -bound, bound)
        b = jax.random.uniform(kb, (fan_out,), jnp.float32, -bound, bound)
        return w, b

    w1, b1 = lin(ks[0], ks[1], in_size, hidden_size)
    w2, b2 = lin(ks[2], ks[3], hidden_size, hidden_size)
    w3, b3 = lin(ks[4], ks[5], hidden_size, out_size)

    # BatchNorm1d params + running stats (eval-mode).
    g1 = 1.0 + 0.1 * jax.random.normal(ks[6], (hidden_size,), jnp.float32)
    beta1 = 0.1 * jax.random.normal(ks[7], (hidden_size,), jnp.float32)
    m1 = 0.05 * jnp.arange(hidden_size, dtype=jnp.float32) / hidden_size
    v1 = 1.0 + 0.01 * jnp.arange(hidden_size, dtype=jnp.float32)

    g2 = jnp.ones((hidden_size,), jnp.float32) * 0.9
    beta2 = jnp.full((hidden_size,), 0.05, jnp.float32)
    m2 = jnp.zeros((hidden_size,), jnp.float32)
    v2 = jnp.ones((hidden_size,), jnp.float32)

    return (w1, b1, g1, beta1, m1, v1,
            w2, b2, g2, beta2, m2, v2,
            w3, b3)


def _reference(sequence, params):
    """Pure-JAX float32 reference of the original forward pass."""
    B = sequence.shape[0]
    x = sequence.reshape(B, -1)
    (w1, b1, g1, beta1, m1, v1,
     w2, b2, g2, beta2, m2, v2,
     w3, b3) = params
    eps = 1e-5
    h = x @ w1 + b1
    h = (h - m1) / jnp.sqrt(v1 + eps) * g1 + beta1
    h = jnp.maximum(h, 0.0)
    h = h @ w2 + b2
    h = (h - m2) / jnp.sqrt(v2 + eps) * g2 + beta2
    h = jnp.maximum(h, 0.0)
    return h @ w3 + b3


if __name__ == "__main__":
    # Shapes implied by the module: alphabet_size=4, len_sequence=8,
    # hidden_size=32, embedding_size=16, layers=3.
    B, L, A = 8, 8, 4
    hidden_size, embedding_size = 32, 16
    in_size = A * L

    key = jax.random.PRNGKey(0)
    k_seq, k_par, k_seq2 = jax.random.split(key, 3)

    # One-hot sequences, deterministic.
    idx = jax.random.randint(k_seq, (B, L), 0, A)
    sequence = jax.nn.one_hot(idx, A, dtype=jnp.float32)          # (B, L, A)

    params = _init_params(k_par, in_size, hidden_size, embedding_size)
    prepared = prepare_params(params)   # one-time fold + pad + bf16 cast

    # Single jit over glue + kernel so the reshape/cast/slice fuse around the
    # custom call (prepared arrays become jit constants; emb stays static).
    fwd = jax.jit(lambda s: mlp_encoder_forward(s, prepared))

    # Small-batch (grid-free) path.
    emb = jax.block_until_ready(fwd(sequence))
    ref = _reference(sequence, params)
    assert emb.shape == (B, embedding_size)
    # bf16 MXU inputs + bf16 output store => ~1e-2-level differences vs f32 ref.
    assert jnp.allclose(emb, ref, atol=4e-2, rtol=4e-2)

    # Larger (non-multiple-of-tile) batch exercising the batch-tiled grid path:
    # tile capped so the grid has 2 "parallel" steps (v7x megacore), batch
    # padding, resident weights, tile_b=512.
    B2 = 1000
    idx2 = jax.random.randint(k_seq2, (B2, L), 0, A)
    sequence2 = jax.nn.one_hot(idx2, A, dtype=jnp.float32)        # (B2, L, A)
    emb2 = jax.block_until_ready(fwd(sequence2))
    ref2 = _reference(sequence2, params)
    assert emb2.shape == (B2, embedding_size)
    assert jnp.allclose(emb2, ref2, atol=4e-2, rtol=4e-2)

    print("KERNEL_OK")
</pallas_src>

<mosaic_0001>
module attributes {stable_mosaic.version = 11 : i64} {
  func.func @mlp_kernel(%arg0: memref<8x32xbf16, #tpu.memory_space<vmem>>, %arg1: memref<32x128xbf16, #tpu.memory_space<vmem>>, %arg2: memref<128x128xbf16, #tpu.memory_space<vmem>>, %arg3: memref<128x128xbf16, #tpu.memory_space<vmem>>, %arg4: memref<8x128xf32, #tpu.memory_space<vmem>>, %arg5: memref<8x128xbf16, #tpu.memory_space<vmem>>) attributes {dimension_semantics = [], scalar_prefetch = 0 : i64, scratch_operands = 0 : i64, tpu.core_type = #tpu.core_type<tc>} {
    %c0 = arith.constant 0 : index
    %c0_0 = arith.constant 0 : index
    %0 = vector.load %arg0[%c0, %c0_0] : memref<8x32xbf16, #tpu.memory_space<vmem>>, vector<8x32xbf16>
    %c0_1 = arith.constant 0 : index
    %c0_2 = arith.constant 0 : index
    %1 = vector.load %arg4[%c0_1, %c0_2] : memref<8x128xf32, #tpu.memory_space<vmem>>, vector<1x128xf32>
    %c1 = arith.constant 1 : index
    %c0_3 = arith.constant 0 : index
    %2 = vector.load %arg4[%c1, %c0_3] : memref<8x128xf32, #tpu.memory_space<vmem>>, vector<1x128xf32>
    %c2 = arith.constant 2 : index
    %c0_4 = arith.constant 0 : index
    %3 = vector.load %arg4[%c2, %c0_4] : memref<8x128xf32, #tpu.memory_space<vmem>>, vector<1x128xf32>
    %c0_5 = arith.constant 0 : index
    %c0_6 = arith.constant 0 : index
    %4 = vector.load %arg1[%c0_5, %c0_6] : memref<32x128xbf16, #tpu.memory_space<vmem>>, vector<32x128xbf16>
    %cst = arith.constant dense<0.000000e+00> : vector<8x128xf32>
    %5 = tpu.matmul %0, %4, %cst {dimension_numbers = #tpu.dot_dimension_numbers<[1], [0], [0], [1], [0, 0, 1, 1], [], []>} : vector<8x32xbf16>, vector<32x128xbf16>, vector<8x128xf32> -> vector<8x128xf32>
    %6 = vector.broadcast %1 : vector<1x128xf32> to vector<8x128xf32>
    %7 = arith.addf %5, %6 : vector<8x128xf32>
    %cst_7 = arith.constant 0.000000e+00 : f32
    %8 = vector.broadcast %cst_7 : f32 to vector<8x128xf32>
    %9 = arith.maximumf %7, %8 : vector<8x128xf32>
    %10 = arith.truncf %9 : vector<8x128xf32> to vector<8x128xbf16>
    %c0_8 = arith.constant 0 : index
    %c0_9 = arith.constant 0 : index
    %11 = vector.load %arg2[%c0_8, %c0_9] : memref<128x128xbf16, #tpu.memory_space<vmem>>, vector<128x128xbf16>
    %cst_10 = arith.constant dense<0.000000e+00> : vector<8x128xf32>
    %12 = tpu.matmul %10, %11, %cst_10 {dimension_numbers = #tpu.dot_dimension_numbers<[1], [0], [0], [1], [0, 0, 1, 1], [], []>} : vector<8x128xbf16>, vector<128x128xbf16>, vector<8x128xf32> -> vector<8x128xf32>
    %13 = vector.broadcast %2 : vector<1x128xf32> to vector<8x128xf32>
    %14 = arith.addf %12, %13 : vector<8x128xf32>
    %cst_11 = arith.constant 0.000000e+00 : f32
    %15 = vector.broadcast %cst_11 : f32 to vector<8x128xf32>
    %16 = arith.maximumf %14, %15 : vector<8x128xf32>
    %17 = arith.truncf %16 : vector<8x128xf32> to vector<8x128xbf16>
    %c0_12 = arith.constant 0 : index
    %c0_13 = arith.constant 0 : index
    %18 = vector.load %arg3[%c0_12, %c0_13] : memref<128x128xbf16, #tpu.memory_space<vmem>>, vector<128x128xbf16>
    %cst_14 = arith.constant dense<0.000000e+00> : vector<8x128xf32>
    %19 = tpu.matmul %17, %18, %cst_14 {dimension_numbers = #tpu.dot_dimension_numbers<[1], [0], [0], [1], [0, 0, 1, 1], [], []>} : vector<8x128xbf16>, vector<128x128xbf16>, vector<8x128xf32> -> vector<8x128xf32>
    %20 = vector.broadcast %3 : vector<1x128xf32> to vector<8x128xf32>
    %21 = arith.addf %19, %20 : vector<8x128xf32>
    %22 = arith.truncf %21 : vector<8x128xf32> to vector<8x128xbf16>
    %c0_15 = arith.constant 0 : index
    %c0_16 = arith.constant 0 : index
    %23 = vector.load %arg5[%c0_15, %c0_16] : memref<8x128xbf16, #tpu.memory_space<vmem>>, vector<8x128xbf16>
    tpu.vector_store %arg5[%c0_15, %c0_16], %22 {strides = array<i32>} : memref<8x128xbf16, #tpu.memory_space<vmem>>, vector<8x128xbf16>,
    return
  }
}

</mosaic_0001>

<llo_original>
// kernel: _lambda_.1
$region0: #{_lambda_.1}
  #allocation0 [shape = 'u32[]', space=smem, size = 0x4, offset = 0x4, fixed_abs, tag = 'smem constant byte address 0x4 - core index']
  #allocation1 [shape = 'u32[144,128]{1,0:T(1,128)}', space=vmem, size = 0x12000, scoped, tag = 'internal scratch']
  %s0 = inlined_call_operand.vmem [shape: bf16[8,32], index: 0, kind: input, shape index: {}]
  %s1 = inlined_call_operand.vmem [shape: bf16[32,128], index: 1, kind: input, shape index: {}]
  %s2 = inlined_call_operand.hbm [shape: bf16[128,128], index: 2, kind: input, shape index: {}]
  %s3 = inlined_call_operand.vmem [shape: bf16[128,128], index: 3, kind: input, shape index: {}]
  %s4 = inlined_call_operand.vmem [shape: f32[8,128], index: 4, kind: input, shape index: {}]
  %s5 = inlined_call_operand.vmem [shape: bf16[8,128], index: 5, kind: output, shape index: {}]
  %s6 = sld [smem:[#allocation0]]
  $region34: #{_lambda_.1} parent=0
    _
  %s8 = ssub.s32 1, %s6
  %s9 = scalar_select 0, %s8, %s6
  $region1: #{_lambda_.1} parent=0
    #allocation2 [shape = 'u8[32768]{0}', space=vmem, size = 0x8000, scoped, tag = 'input window, operand 2, single buffered']
    #allocation3 [shape = 's32[1]{0}', space=sflag, size = 0x4, scoped, tag = 'scoped memory for _lambda_.1']
    %10 = vsyncpa [#allocation3], 0
    // Predicated region
    $region2: #{_lambda_.1} parent=1 // pred_check
      _
    $region3: #{_lambda_.1} parent=1 // pred_check_branch
      %12 = sbr.rel (0) target = $region5
    $region4: #{_lambda_.1} parent=1 // pred_region
      _
    $region5: #{_lambda_.1} parent=1 // pred_fallthru
      _
    // Predicated region
    $region6: #{_lambda_.1} parent=1 // pred_check
      _
    $region7: #{_lambda_.1} parent=1 // pred_check_branch
      %14 = sbr.rel (0) target = $region9
    $region8: #{_lambda_.1} parent=1 // pred_region
      _
    $region9: #{_lambda_.1} parent=1 // pred_fallthru
      _
    // Predicated region
    $region10: #{_lambda_.1} parent=1 // pred_check
      _
    $region11: #{_lambda_.1} parent=1 // pred_check_branch
      %16 = sbr.rel (0) target = $region13
    $region12: #{_lambda_.1} parent=1 // pred_region
      %s18 = ssub.s32 1024, 1024
      %19 = vsyncadd [#allocation3], %s18
      %s20 = sshll.u32 [#allocation2], 4
      %s21 = int_to_ptr.vmem [resolvable:$true] %s20
      %26 = dma.hbm_to_vmem [thread:$0]  %s2, 1024, %s21, [#allocation3], 64, 64, 4
    $region13: #{_lambda_.1} parent=1 // pred_fallthru
      _
    // Predicated region
    $region14: #{_lambda_.1} parent=1 // pred_check
      _
    $region15: #{_lambda_.1} parent=1 // pred_check_branch
      %28 = sbr.rel (0) target = $region17
    $region16: #{_lambda_.1} parent=1 // pred_region
      _
    $region17: #{_lambda_.1} parent=1 // pred_fallthru
      _
    // Predicated region
    $region18: #{_lambda_.1} parent=1 // pred_check
      _
    $region19: #{_lambda_.1} parent=1 // pred_check_branch
      %30 = sbr.rel (0) target = $region21
    $region20: #{_lambda_.1} parent=1 // pred_region
      _
    $region21: #{_lambda_.1} parent=1 // pred_fallthru
      _
    // Predicated region
    $region22: #{_lambda_.1} parent=1 // pred_check
      _
    $region23: #{_lambda_.1} parent=1 // pred_check_branch
      %32 = sbr.rel (0) target = $region25
    $region24: #{_lambda_.1} parent=1 // pred_region
      %33 = dma.done [#allocation3], 1024
    $region25: #{_lambda_.1} parent=1 // pred_fallthru
      _
    %v35 = vld [vmem:[%s0] sm:$0xf]
    %v36 = vld [vmem:[%s4] sm:$0x1]
    %v37 = vld [vmem:[%s4 + $0x1] sm:$0x1]
    %v38 = vld [vmem:[%s4 + $0x2] sm:$0x1]
    %v39 = vld [vmem:[%s1] sm:$0xf]
    %v40 = vld [vmem:[%s1 + $0x4] sm:$0xf]
    %v41 = vld [vmem:[%s1 + $0x8] sm:$0xf]
    %v42 = vld [vmem:[%s1 + $0xc] sm:$0xf]
    %v43 = vlaneseq
    %v44 = vshrl.u32 %v43, 7
    %v45 = vsub.s32 0, %v44
    %v46 = vrot.slane %v36, %v45
    %v51 = vunpack.c.l.b16 %v39
    %v52 = vunpack.c.l.b16 %v40
    %v53 = vunpack.c.l.b16 %v41
    %v54 = vunpack.c.l.b16 %v42
    %v55 = vpack.c.b16 %v52, %v51
    %v56 = vpack.c.b16 %v54, %v53
    %vm59 = vcmask 261120
    %v61 = vsel %vm59, %v35, 0
    %63 = vmatprep.subr.bf16.mxu0 0
    %64 = vmatpush1.bf16.msra.mxu0 %v55
    %65 = vmatprep.subr.bf16.mxu0 0
    %66 = vmatpush1.bf16.msra.mxu0 %v56
    %67 = vmatprep.subr.bf16.mxu0 0
    %68 = vmatpush1.bf16.msra.mxu0 0
    %69 = vmatprep.subr.bf16.mxu0 0
    %70 = vmatpush1.bf16.msra.mxu0 0
    %71 = vmatprep.subr.bf16.mxu0 0
    %72 = vmatpush1.bf16.msra.mxu0 0
    %73 = vmatprep.subr.bf16.mxu0 0
    %74 = vmatpush1.bf16.msra.mxu0 0
    %75 = vmatprep.subr.bf16.mxu0 0
    %76 = vmatpush1.bf16.msra.mxu0 0
    %77 = vmatprep.subr.bf16.mxu0 0
    %78 = vmatpush1.bf16.msra.mxu0 0
    %79 = vmatprep.subr.bf16.mxu0 0
    %80 = vmatpush1.bf16.msra.mxu0 0
    %81 = vmatprep.subr.bf16.mxu0 0
    %82 = vmatpush1.bf16.msra.mxu0 0
    %83 = vmatprep.subr.bf16.mxu0 0
    %84 = vmatpush1.bf16.msra.mxu0 0
    %85 = vmatprep.subr.bf16.mxu0 0
    %86 = vmatpush1.bf16.msra.mxu0 0
    %87 = vmatprep.subr.bf16.mxu0 0
    %88 = vmatpush1.bf16.msra.mxu0 0
    %89 = vmatprep.subr.bf16.mxu0 0
    %90 = vmatpush1.bf16.msra.mxu0 0
    %91 = vmatprep.subr.bf16.mxu0 0
    %92 = vmatpush1.bf16.msra.mxu0 0
    %93 = vmatprep.subr.bf16.mxu0 0
    %94 = vmatpush1.bf16.msra.mxu0 0
    %95 = vmatprep.mubr.bf16.mxu0 0
    %96 = vmatmul.mubr.bf16.gmra.mrb[0].mxu0 %v61
    %v97 = vpop.f32.mrb[0].mxu0
    %v98 = vadd.f32 %v46, %v97
    %v99 = vpop.f32.mrb[0].mxu0
    %v100 = vpop.f32.mrb[0].mxu0
    %v101 = vpop.f32.mrb[0].mxu0
    %102 = vdwg.mxu0
    %v103 = vmax.f32 %v98, 0.0
    %v104 = vpack.c.bf16 %v103, %v103
    %v105 = vld [vmem:[#allocation2] sm:$0xf]
    %v106 = vld [vmem:[#allocation2 + $0x4] sm:$0xf]
    %v107 = vld [vmem:[#allocation2 + $0x8] sm:$0xf]
    %v108 = vld [vmem:[#allocation2 + $0xc] sm:$0xf]
    %v109 = vld [vmem:[#allocation2 + $0x10] sm:$0xf]
    %v110 = vld [vmem:[#allocation2 + $0x14] sm:$0xf]
    %v111 = vld [vmem:[#allocation2 + $0x18] sm:$0xf]
    %v112 = vld [vmem:[#allocation2 + $0x1c] sm:$0xf]
    %v113 = vld [vmem:[#allocation2 + $0x20] sm:$0xf]
    %v114 = vld [vmem:[#allocation2 + $0x24] sm:$0xf]
    %v115 = vld [vmem:[#allocation2 + $0x28] sm:$0xf]
    %v116 = vld [vmem:[#allocation2 + $0x2c] sm:$0xf]
    %v117 = vld [vmem:[#allocation2 + $0x30] sm:$0xf]
    %v118 = vld [vmem:[#allocation2 + $0x34] sm:$0xf]
    %v119 = vld [vmem:[#allocation2 + $0x38] sm:$0xf]
    %v120 = vld [vmem:[#allocation2 + $0x3c] sm:$0xf]
    %v121 = vlaneseq
    %v122 = vshrl.u32 %v121, 7
    %v123 = vsub.s32 0, %v122
    %v124 = vrot.slane %v37, %v123
    %v141 = vunpack.c.l.b16 %v105
    %v142 = vunpack.c.l.b16 %v106
    %v143 = vunpack.c.l.b16 %v107
    %v144 = vunpack.c.l.b16 %v108
    %v145 = vunpack.c.l.b16 %v109
    %v146 = vunpack.c.l.b16 %v110
    %v147 = vunpack.c.l.b16 %v111
    %v148 = vunpack.c.l.b16 %v112
    %v149 = vunpack.c.l.b16 %v113
    %v150 = vunpack.c.l.b16 %v114
    %v151 = vunpack.c.l.b16 %v115
    %v152 = vunpack.c.l.b16 %v116
    %v153 = vunpack.c.l.b16 %v117
    %v154 = vunpack.c.l.b16 %v118
    %v155 = vunpack.c.l.b16 %v119
    %v156 = vunpack.c.l.b16 %v120
    %v157 = vpack.c.b16 %v142, %v141
    %v158 = vpack.c.b16 %v144, %v143
    %v159 = vpack.c.b16 %v146, %v145
    %v160 = vpack.c.b16 %v148, %v147
    %v161 = vpack.c.b16 %v150, %v149
    %v162 = vpack.c.b16 %v152, %v151
    %v163 = vpack.c.b16 %v154, %v153
    %v164 = vpack.c.b16 %v156, %v155
    %173 = vmatprep.subr.bf16.mxu0 0
    %174 = vmatpush1.bf16.msra.mxu0 %v157
    %175 = vmatprep.subr.bf16.mxu0 0
    %176 = vmatpush1.bf16.msra.mxu0 %v158
    %177 = vmatprep.subr.bf16.mxu0 0
    %178 = vmatpush1.bf16.msra.mxu0 %v159
    %179 = vmatprep.subr.bf16.mxu0 0
    %180 = vmatpush1.bf16.msra.mxu0 %v160
    %181 = vmatprep.subr.bf16.mxu0 0
    %182 = vmatpush1.bf16.msra.mxu0 %v161
    %183 = vmatprep.subr.bf16.mxu0 0
    %184 = vmatpush1.bf16.msra.mxu0 %v162
    %185 = vmatprep.subr.bf16.mxu0 0
    %186 = vmatpush1.bf16.msra.mxu0 %v163
    %187 = vmatprep.subr.bf16.mxu0 0
    %188 = vmatpush1.bf16.msra.mxu0 %v164
    %189 = vmatprep.subr.bf16.mxu0 0
    %190 = vmatpush1.bf16.msra.mxu0 0
    %191 = vmatprep.subr.bf16.mxu0 0
    %192 = vmatpush1.bf16.msra.mxu0 0
    %193 = vmatprep.subr.bf16.mxu0 0
    %194 = vmatpush1.bf16.msra.mxu0 0
    %195 = vmatprep.subr.bf16.mxu0 0
    %196 = vmatpush1.bf16.msra.mxu0 0
    %197 = vmatprep.subr.bf16.mxu0 0
    %198 = vmatpush1.bf16.msra.mxu0 0
    %199 = vmatprep.subr.bf16.mxu0 0
    %200 = vmatpush1.bf16.msra.mxu0 0
    %201 = vmatprep.subr.bf16.mxu0 0
    %202 = vmatpush1.bf16.msra.mxu0 0
    %203 = vmatprep.subr.bf16.mxu0 0
    %204 = vmatpush1.bf16.msra.mxu0 0
    %205 = vmatprep.mubr.bf16.mxu0 0
    %206 = vmatmul.mubr.bf16.gmra.mrb[0].mxu0 %v104
    %v207 = vpop.f32.mrb[0].mxu0
    %v208 = vadd.f32 %v124, %v207
    %v209 = vpop.f32.mrb[0].mxu0
    %v210 = vpop.f32.mrb[0].mxu0
    %v211 = vpop.f32.mrb[0].mxu0
    %212 = vdwg.mxu0
    %v213 = vmax.f32 %v208, 0.0
    %v214 = vpack.c.bf16 %v213, %v213
    %v215 = vld [vmem:[%s3] sm:$0xf]
    %v216 = vld [vmem:[%s3 + $0x4] sm:$0xf]
    %v217 = vld [vmem:[%s3 + $0x8] sm:$0xf]
    %v218 = vld [vmem:[%s3 + $0xc] sm:$0xf]
    %v219 = vld [vmem:[%s3 + $0x10] sm:$0xf]
    %v220 = vld [vmem:[%s3 + $0x14] sm:$0xf]
    %v221 = vld [vmem:[%s3 + $0x18] sm:$0xf]
    %v222 = vld [vmem:[%s3 + $0x1c] sm:$0xf]
    %v223 = vld [vmem:[%s3 + $0x20] sm:$0xf]
    %v224 = vld [vmem:[%s3 + $0x24] sm:$0xf]
    %v225 = vld [vmem:[%s3 + $0x28] sm:$0xf]
    %v226 = vld [vmem:[%s3 + $0x2c] sm:$0xf]
    %v227 = vld [vmem:[%s3 + $0x30] sm:$0xf]
    %v228 = vld [vmem:[%s3 + $0x34] sm:$0xf]
    %v229 = vld [vmem:[%s3 + $0x38] sm:$0xf]
    %v230 = vld [vmem:[%s3 + $0x3c] sm:$0xf]
    %v231 = vlaneseq
    %v232 = vshrl.u32 %v231, 7
    %v233 = vsub.s32 0, %v232
    %v234 = vrot.slane %v38, %v233
    %v251 = vunpack.c.l.b16 %v215
    %v252 = vunpack.c.l.b16 %v216
    %v253 = vunpack.c.l.b16 %v217
    %v254 = vunpack.c.l.b16 %v218
    %v255 = vunpack.c.l.b16 %v219
    %v256 = vunpack.c.l.b16 %v220
    %v257 = vunpack.c.l.b16 %v221
    %v258 = vunpack.c.l.b16 %v222
    %v259 = vunpack.c.l.b16 %v223
    %v260 = vunpack.c.l.b16 %v224
    %v261 = vunpack.c.l.b16 %v225
    %v262 = vunpack.c.l.b16 %v226
    %v263 = vunpack.c.l.b16 %v227
    %v264 = vunpack.c.l.b16 %v228
    %v265 = vunpack.c.l.b16 %v229
    %v266 = vunpack.c.l.b16 %v230
    %v267 = vpack.c.b16 %v252, %v251
    %v268 = vpack.c.b16 %v254, %v253
    %v269 = vpack.c.b16 %v256, %v255
    %v270 = vpack.c.b16 %v258, %v257
    %v271 = vpack.c.b16 %v260, %v259
    %v272 = vpack.c.b16 %v262, %v261
    %v273 = vpack.c.b16 %v264, %v263
    %v274 = vpack.c.b16 %v266, %v265
    %283 = vmatprep.subr.bf16.mxu0 0
    %284 = vmatpush1.bf16.msra.mxu0 %v267
    %285 = vmatprep.subr.bf16.mxu0 0
    %286 = vmatpush1.bf16.msra.mxu0 %v268
    %287 = vmatprep.subr.bf16.mxu0 0
    %288 = vmatpush1.bf16.msra.mxu0 %v269
    %289 = vmatprep.subr.bf16.mxu0 0
    %290 = vmatpush1.bf16.msra.mxu0 %v270
    %291 = vmatprep.subr.bf16.mxu0 0
    %292 = vmatpush1.bf16.msra.mxu0 %v271
    %293 = vmatprep.subr.bf16.mxu0 0
    %294 = vmatpush1.bf16.msra.mxu0 %v272
    %295 = vmatprep.subr.bf16.mxu0 0
    %296 = vmatpush1.bf16.msra.mxu0 %v273
    %297 = vmatprep.subr.bf16.mxu0 0
    %298 = vmatpush1.bf16.msra.mxu0 %v274
    %299 = vmatprep.subr.bf16.mxu0 0
    %300 = vmatpush1.bf16.msra.mxu0 0
    %301 = vmatprep.subr.bf16.mxu0 0
    %302 = vmatpush1.bf16.msra.mxu0 0
    %303 = vmatprep.subr.bf16.mxu0 0
    %304 = vmatpush1.bf16.msra.mxu0 0
    %305 = vmatprep.subr.bf16.mxu0 0
    %306 = vmatpush1.bf16.msra.mxu0 0
    %307 = vmatprep.subr.bf16.mxu0 0
    %308 = vmatpush1.bf16.msra.mxu0 0
    %309 = vmatprep.subr.bf16.mxu0 0
    %310 = vmatpush1.bf16.msra.mxu0 0
    %311 = vmatprep.subr.bf16.mxu0 0
    %312 = vmatpush1.bf16.msra.mxu0 0
    %313 = vmatprep.subr.bf16.mxu0 0
    %314 = vmatpush1.bf16.msra.mxu0 0
    %315 = vmatprep.mubr.bf16.mxu0 0
    %316 = vmatmul.mubr.bf16.gmra.mrb[0].mxu0 %v214
    %v317 = vpop.f32.mrb[0].mxu0
    %v318 = vadd.f32 %v234, %v317
    %v319 = vpop.f32.mrb[0].mxu0
    %v320 = vpop.f32.mrb[0].mxu0
    %v321 = vpop.f32.mrb[0].mxu0
    %322 = vdwg.mxu0
    %v323 = vpack.c.bf16 %v318, %v318
    %324 = vst [vmem:[%s5] sm:$0xf] %v323
    // Predicated region
    $region26: #{_lambda_.1} parent=1 // pred_check
      _
    $region27: #{_lambda_.1} parent=1 // pred_check_branch
      %326 = sbr.rel (0) target = $region29
    $region28: #{_lambda_.1} parent=1 // pred_region
      _
    $region29: #{_lambda_.1} parent=1 // pred_fallthru
      _
    // Predicated region
    $region30: #{_lambda_.1} parent=1 // pred_check
      _
    $region31: #{_lambda_.1} parent=1 // pred_check_branch
      %328 = sbr.rel (0) target = $region33
    $region32: #{_lambda_.1} parent=1 // pred_region
      _
    $region33: #{_lambda_.1} parent=1 // pred_fallthru
      _
    %329 = vsyncpa [#allocation3], 1

</llo_original>
